<compile_context>
chip_gen: v6e
topology: v6e:2x2x1
jax: 0.10.0
libtpu: 0.0.40
codegen_flags: <defaults>
</compile_context>

<pallas_src>
import functools

import jax
import jax.numpy as jnp
from jax.experimental import pallas as pl
from jax.experimental.pallas import tpu as pltpu


def _round_up(v, m):
    return (v + m - 1) // m * m


# --------------------------------------------------------------------------
# Kernel bodies
# --------------------------------------------------------------------------

def _gru_core(hx, w_main, w_qh, b, H, HP):
    """Shared GRU math on one packed row tile.

    hx     : [T, HXP] bf16, lanes [0:H)=h, [H:H+I)=x, rest 0
    w_main : [HXP, 3*HP] bf16  rows [0:H) = [wzh | wrh | 0],
                               rows [H:H+I) = [wzx | wrx | wqx]
    w_qh   : [HP, HP] bf16     (h-side weight of q, applied to r*h)
    b      : [1, 3*HP] f32     (bz | br | bq, padded)
    Returns the new hidden state, f32 [T, HP], with lanes >= H zeroed so it
    can be carried / re-packed directly.
    """
    # One fused MXU dot: h-side of z,r plus x-side of z,r,q (+ fused bias).
    main = jnp.dot(hx, w_main, preferred_element_type=jnp.float32) + b

    zr = jax.nn.sigmoid(main[:, : 2 * HP])          # 128-lane aligned slices
    z = zr[:, :HP]
    r = zr[:, HP:]

    h32 = hx[:, :HP].astype(jnp.float32)            # h lives in lanes [0:H)
    rh = (r * h32).astype(hx.dtype)                 # bf16 for the MXU
    q = jnp.tanh(
        jnp.dot(rh, w_qh, preferred_element_type=jnp.float32) + main[:, 2 * HP:]
    )

    # (1-z)*h + z*q  ==  h + z*(q - h): one fewer f32 vmul (helps v5e VALU).
    h_new = h32 + z * (q - h32)

    # Zero padded lanes (>= H): garbage there (0.5*x on [H:H+I)) must not leak
    # into a carried / packed state.
    lane = jax.lax.broadcasted_iota(jnp.int32, h_new.shape, dimension=1)
    return jnp.where(lane < H, h_new, 0.0)


def _gru_step_kernel(hx_ref, w_main_ref, w_qh_ref, b_ref, o_ref, *, H):
    HP = o_ref.shape[-1]
    h_new = _gru_core(hx_ref[...], w_main_ref[...], w_qh_ref[...], b_ref[...], H, HP)
    o_ref[...] = h_new.astype(o_ref.dtype)


def _gru_rollout_kernel(h0_ref, xp_ref, w_main_ref, w_qh_ref, b_ref, o_ref,
                        hx_scr, *, H):
    """Fused time recurrence for one row tile; grid = (row_tiles, T)."""
    HP = o_ref.shape[-1]

    @pl.when(pl.program_id(1) == 0)
    def _():
        hx_scr[...] = h0_ref[...]                   # (re)load h0 per row tile

    # Carried h has zeros on lanes >= H, x_t is pre-packed into lanes [H:H+I).
    hx = hx_scr[...] + xp_ref[...]
    h_new = _gru_core(hx, w_main_ref[...], w_qh_ref[...], b_ref[...], H, HP)
    hx_scr[:, :HP] = h_new.astype(hx_scr.dtype)     # carry bf16 hidden state
    o_ref[...] = h_new.astype(o_ref.dtype)


# --------------------------------------------------------------------------
# Parameter prep (one-time, hoisted out of the per-step path)
# --------------------------------------------------------------------------

def prepare_gru_params(params, compute_dtype=jnp.bfloat16):
    """Transpose, fuse gates, pack x rows under the h rows, pad to lane-dense
    128-multiples, cast to bf16."""
    H, HI = params["wz"].shape
    I = HI - H
    HP = _round_up(H, 128)           # padded hidden (output) width
    HXP = _round_up(H + I, 128)      # packed [h | x] input width  (>= HP)

    def split_t(w):                  # torch Linear weight [out, in] -> [in, out]
        wt = jnp.transpose(w).astype(jnp.float32)     # [H+I, H]
        return wt[:H, :], wt[H:, :]                   # h-rows [H,H], x-rows [I,H]

    def pad_cols(w):                 # [*, H] -> [*, HP]
        return jnp.pad(w, ((0, 0), (0, HP - H)))

    wzh, wzx = split_t(params["wz"])
    wrh, wrx = split_t(params["wr"])
    wqh, wqx = split_t(params["wq"])

    # Fused "main" weight: rows [0:H) = h-side of z,r (q's h-side is separate
    # because it acts on r*h); rows [H:H+I) = x-side of z,r,q.
    w_h_rows = jnp.concatenate(
        [pad_cols(wzh), pad_cols(wrh), jnp.zeros((H, HP), jnp.float32)], axis=1)
    w_x_rows = jnp.concatenate(
        [pad_cols(wzx), pad_cols(wrx), pad_cols(wqx)], axis=1)
    w_main = jnp.concatenate([w_h_rows, w_x_rows], axis=0)            # [H+I, 3HP]
    w_main = jnp.pad(w_main, ((0, HXP - (H + I)), (0, 0))).astype(compute_dtype)

    w_qh = jnp.pad(pad_cols(wqh), ((0, HP - H), (0, 0))).astype(compute_dtype)

    def pad_b(bv):
        return jnp.pad(bv.astype(jnp.float32), (0, HP - H))

    b = jnp.concatenate(
        [pad_b(params["bz"]), pad_b(params["br"]), pad_b(params["bq"])]
    ).reshape(1, 3 * HP)                                               # f32 bias

    return {
        "w_main": w_main, "w_qh": w_qh, "b": b,
        "hidden_dim": H, "input_dim": I, "hidden_pad": HP, "hx_pad": HXP,
        "compute_dtype": compute_dtype,
    }


# --------------------------------------------------------------------------
# Tiling / VMEM budgeting
# --------------------------------------------------------------------------

def _select_tile(B, prep, block_rows, vmem_budget_bytes):
    HP, HXP = prep["hidden_pad"], prep["hx_pad"]
    itm = jnp.dtype(prep["compute_dtype"]).itemsize
    row_align = 16 if itm < 4 else 8          # bf16 packs two rows per sublane

    # Weights + bias are single-buffered; activations (in + out) double-buffered.
    w_bytes = HXP * 3 * HP * itm + HP * HP * itm + 3 * HP * 4
    per_row = 2 * (HXP * itm + HP * itm)
    avail = max(vmem_budget_bytes - w_bytes, row_align * per_row)
    max_rows = max(row_align, (avail // per_row) // row_align * row_align)

    tile = min(block_rows, max_rows, _round_up(B, row_align))
    # Aim for several row tiles so v7x's two TensorCores split the grid and
    # input/output DMAs overlap with compute.
    want = min(4, max(1, B // row_align))
    tile = max(row_align, min(tile, _round_up(pl.cdiv(B, want), row_align)))
    tile = _round_up(tile, row_align)

    bp = _round_up(B, tile)
    vmem_limit = int(min(max(2 * (w_bytes + tile * per_row), 16 * 2**20),
                         100 * 2**20))
    return tile, bp, vmem_limit


def _const_spec(shape):
    # Constant index_map -> fetched once; single-buffer to halve weight VMEM.
    return pl.BlockSpec(shape, lambda *idx: (0,) * len(shape),
                        pipeline_mode=pl.Buffered(1))


# --------------------------------------------------------------------------
# Wrappers
# --------------------------------------------------------------------------

def conv_gru_cell_pallas(h, x, prep, *, block_rows=512,
                         vmem_budget_bytes=16 * 2**20):
    """Single GRU step (== ConvGRUCell.forward). h: [..., H], x: [..., I]."""
    H, I = prep["hidden_dim"], prep["input_dim"]
    HP, HXP = prep["hidden_pad"], prep["hx_pad"]
    cdt = prep["compute_dtype"]

    lead = h.shape[:-1]
    B = 1
    for d in lead:
        B *= d

    tile, BP, vmem_limit = _select_tile(B, prep, block_rows, vmem_budget_bytes)

    # Pack [h | x] into one lane-dense bf16 tile (zeros beyond H+I).
    hx = jnp.concatenate([h.reshape(B, H), x.reshape(B, I)], axis=-1).astype(cdt)
    hx_p = jnp.zeros((BP, HXP), cdt).at[:B, :H + I].set(hx)

    out = pl.pallas_call(
        functools.partial(_gru_step_kernel, H=H),
        out_shape=jax.ShapeDtypeStruct((BP, HP), cdt),   # bf16 writeback
        grid=(BP // tile,),
        in_specs=[
            pl.BlockSpec((tile, HXP), lambda i: (i, 0)),  # packed [h|x] rows
            _const_spec((HXP, 3 * HP)),                   # fused main weights
            _const_spec((HP, HP)),                        # q h-side weight
            _const_spec((1, 3 * HP)),                     # fused biases (f32)
        ],
        out_specs=pl.BlockSpec((tile, HP), lambda i: (i, 0)),
        compiler_params=pltpu.CompilerParams(
            dimension_semantics=("parallel",),
            vmem_limit_bytes=vmem_limit,
        ),
    )(hx_p, prep["w_main"], prep["w_qh"], prep["b"])

    return out[:B, :H].astype(h.dtype).reshape(*lead, H)


def conv_gru_rollout_pallas(h0, xs, prep, *, block_rows=512,
                            vmem_budget_bytes=16 * 2**20):
    """Fused sequence rollout: xs [T, ..., I], h0 [..., H] -> all states
    [T, ..., H].  One pallas_call, grid=(row_tiles, T); weights stay
    VMEM-resident, h carried in a VMEM scratch accumulator."""
    H, I = prep["hidden_dim"], prep["input_dim"]
    HP, HXP = prep["hidden_pad"], prep["hx_pad"]
    cdt = prep["compute_dtype"]

    T = xs.shape[0]
    lead = h0.shape[:-1]
    B = 1
    for d in lead:
        B *= d

    tile, BP, vmem_limit = _select_tile(B, prep, block_rows, vmem_budget_bytes)

    h0_p = jnp.zeros((BP, HXP), cdt).at[:B, :H].set(h0.reshape(B, H).astype(cdt))
    # Pre-pack x_t into lanes [H:H+I) once, up front (no per-step packing).
    xs_p = jnp.zeros((T, BP, HXP), cdt).at[:, :B, H:H + I].set(
        xs.reshape(T, B, I).astype(cdt))

    out = pl.pallas_call(
        functools.partial(_gru_rollout_kernel, H=H),
        out_shape=jax.ShapeDtypeStruct((T, BP, HP), cdt),
        grid=(BP // tile, T),
        in_specs=[
            pl.BlockSpec((tile, HXP), lambda r, t: (r, 0)),           # h0
            pl.BlockSpec((None, tile, HXP), lambda r, t: (t, r, 0)),  # packed x_t
            _const_spec((HXP, 3 * HP)),
            _const_spec((HP, HP)),
            _const_spec((1, 3 * HP)),
        ],
        out_specs=pl.BlockSpec((None, tile, HP), lambda r, t: (t, r, 0)),
        scratch_shapes=[pltpu.VMEM((tile, HXP), cdt)],                # h carry
        compiler_params=pltpu.CompilerParams(
            dimension_semantics=("parallel", "arbitrary"),
            vmem_limit_bytes=vmem_limit,
        ),
    )(h0_p, xs_p, prep["w_main"], prep["w_qh"], prep["b"])

    return out[:, :B, :H].astype(h0.dtype).reshape(T, *lead, H)


# --------------------------------------------------------------------------
# References
# --------------------------------------------------------------------------

def _reference_f32(h, x, params):
    hx = jnp.concatenate([h, x], axis=-1)
    z = jax.nn.sigmoid(hx @ params["wz"].T + params["bz"])
    r = jax.nn.sigmoid(hx @ params["wr"].T + params["br"])
    rhx = jnp.concatenate([r * h, x], axis=-1)
    q = jnp.tanh(rhx @ params["wq"].T + params["bq"])
    return (1.0 - z) * h + z * q


def _reference_bf16(h, x, params):
    # Mirrors the kernel's bf16-operand / f32-accumulate numerics.
    qb = lambda a: a.astype(jnp.bfloat16).astype(jnp.float32)
    hq, xq = qb(h), qb(x)
    wz, wr, wq = qb(params["wz"]), qb(params["wr"]), qb(params["wq"])
    hx = jnp.concatenate([hq, xq], axis=-1)
    z = jax.nn.sigmoid(hx @ wz.T + params["bz"])
    r = jax.nn.sigmoid(hx @ wr.T + params["br"])
    rhx = jnp.concatenate([qb(r * hq), xq], axis=-1)
    q = jnp.tanh(rhx @ wq.T + params["bq"])
    return (1.0 - z) * hq + z * q


def _reference_rollout_bf16(h0, xs, params):
    def step(h, x):
        h_new = _reference_bf16(h, x, params)
        h_new = h_new.astype(jnp.bfloat16).astype(jnp.float32)  # bf16 carry
        return h_new, h_new
    _, hs = jax.lax.scan(step, h0.astype(jnp.float32), xs)
    return hs


# --------------------------------------------------------------------------

if __name__ == "__main__":
    input_dim = 32
    hidden_dim = 32
    batch, seq = 2, 8   # leading dims, flattened to B = 16 rows in the wrapper

    key = jax.random.PRNGKey(0)
    k = jax.random.split(key, 10)
    scale = 1.0 / jnp.sqrt(hidden_dim + input_dim)

    params = {
        "wz": jax.random.uniform(k[0], (hidden_dim, hidden_dim + input_dim),
                                 jnp.float32, -scale, scale),
        "bz": jax.random.uniform(k[1], (hidden_dim,), jnp.float32, -scale, scale),
        "wr": jax.random.uniform(k[2], (hidden_dim, hidden_dim + input_dim),
                                 jnp.float32, -scale, scale),
        "br": jax.random.uniform(k[3], (hidden_dim,), jnp.float32, -scale, scale),
        "wq": jax.random.uniform(k[4], (hidden_dim, hidden_dim + input_dim),
                                 jnp.float32, -scale, scale),
        "bq": jax.random.uniform(k[5], (hidden_dim,), jnp.float32, -scale, scale),
    }

    h = jax.random.normal(k[6], (batch, seq, hidden_dim), jnp.float32)
    x = jax.random.normal(k[7], (batch, seq, input_dim), jnp.float32)

    prep = prepare_gru_params(params)          # one-time parameter prep

    # --- single step (matches ConvGRUCell.forward) ---
    h_new = conv_gru_cell_pallas(h, x, prep)
    jax.block_until_ready(h_new)

    h_ref_f = _reference_f32(h, x, params)
    h_ref_q = _reference_bf16(h, x, params)
    h_ref_qr = h_ref_q.astype(jnp.bfloat16).astype(jnp.float32)  # bf16 output

    assert h_new.shape == h_ref_f.shape
    err_q = float(jnp.max(jnp.abs(h_new.astype(jnp.float32) - h_ref_qr)))
    err_f = float(jnp.max(jnp.abs(h_new.astype(jnp.float32) - h_ref_f)))
    assert err_q < 2.5e-2, f"mismatch vs bf16-quantized reference: {err_q}"
    assert err_f < 1e-1, f"mismatch vs f32 reference: {err_f}"

    # --- fused sequence rollout (time recurrence in one pallas_call) ---
    T, rb = 6, 4
    h0 = jax.random.normal(k[8], (rb, hidden_dim), jnp.float32)
    xs = jax.random.normal(k[9], (T, rb, input_dim), jnp.float32)

    hs = conv_gru_rollout_pallas(h0, xs, prep)
    jax.block_until_ready(hs)

    hs_ref_q = _reference_rollout_bf16(h0, xs, params)
    hs_ref_f, _ = jax.lax.scan(
        lambda c, xt: (_reference_f32(c, xt, params),) * 2, h0, xs)[1], None

    assert hs.shape == (T, rb, hidden_dim)
    err_r = float(jnp.max(jnp.abs(hs.astype(jnp.float32) - hs_ref_q)))
    assert err_r < 4e-2, f"rollout mismatch vs bf16 scan reference: {err_r}"

    print("KERNEL_OK")
</pallas_src>

<mosaic_0001>
module attributes {stable_mosaic.version = 11 : i64} {
  func.func @_gru_step_kernel(%arg0: i32, %arg1: memref<16x128xbf16, #tpu.memory_space<vmem>>, %arg2: memref<128x384xbf16, #tpu.memory_space<vmem>>, %arg3: memref<128x128xbf16, #tpu.memory_space<vmem>>, %arg4: memref<1x384xf32, #tpu.memory_space<vmem>>, %arg5: memref<16x128xbf16, #tpu.memory_space<vmem>>) attributes {dimension_semantics = [#tpu.dimension_semantics<parallel>], iteration_bounds = array<i64: 1>, scalar_prefetch = 0 : i64, scratch_operands = 0 : i64, tpu.core_type = #tpu.core_type<tc>, window_params = [{transform_indices = @transform_0, window_bounds = array<i64: 16, 128>}, {pipeline_mode = #tpu.pipeline_mode<synchronous>, transform_indices = @transform_1, window_bounds = array<i64: 128, 384>}, {pipeline_mode = #tpu.pipeline_mode<synchronous>, transform_indices = @transform_2, window_bounds = array<i64: 128, 128>}, {pipeline_mode = #tpu.pipeline_mode<synchronous>, transform_indices = @transform_3, window_bounds = array<i64: 1, 384>}, {transform_indices = @transform_4, window_bounds = array<i64: 16, 128>}]} {
    %c0 = arith.constant 0 : index
    %c0_0 = arith.constant 0 : index
    %0 = vector.load %arg1[%c0, %c0_0] : memref<16x128xbf16, #tpu.memory_space<vmem>>, vector<16x128xbf16>
    %c0_1 = arith.constant 0 : index
    %c0_2 = arith.constant 0 : index
    %1 = vector.load %arg2[%c0_1, %c0_2] : memref<128x384xbf16, #tpu.memory_space<vmem>>, vector<128x384xbf16>
    %c0_3 = arith.constant 0 : index
    %c0_4 = arith.constant 0 : index
    %2 = vector.load %arg3[%c0_3, %c0_4] : memref<128x128xbf16, #tpu.memory_space<vmem>>, vector<128x128xbf16>
    %c0_5 = arith.constant 0 : index
    %c0_6 = arith.constant 0 : index
    %3 = vector.load %arg4[%c0_5, %c0_6] : memref<1x384xf32, #tpu.memory_space<vmem>>, vector<1x384xf32>
    %cst = arith.constant dense<0.000000e+00> : vector<16x384xf32>
    %4 = tpu.matmul %0, %1, %cst {dimension_numbers = #tpu.dot_dimension_numbers<[1], [0], [0], [1], [0, 0, 1, 1], [], []>} : vector<16x128xbf16>, vector<128x384xbf16>, vector<16x384xf32> -> vector<16x384xf32>
    %5 = vector.broadcast %3 : vector<1x384xf32> to vector<16x384xf32>
    %6 = arith.addf %4, %5 : vector<16x384xf32>
    %7 = vector.extract_strided_slice %6 {offsets = [0, 0], sizes = [16, 256], strides = [1, 1]} : vector<16x384xf32> to vector<16x256xf32>
    %8 = arith.negf %7 : vector<16x256xf32>
    %9 = math.exp %8 : vector<16x256xf32>
    %cst_7 = arith.constant 1.000000e+00 : f32
    %10 = vector.broadcast %cst_7 : f32 to vector<16x256xf32>
    %11 = arith.addf %10, %9 : vector<16x256xf32>
    %12 = arith.divf %10, %11 : vector<16x256xf32>
    %13 = vector.extract_strided_slice %12 {offsets = [0, 0], sizes = [16, 128], strides = [1, 1]} : vector<16x256xf32> to vector<16x128xf32>
    %14 = vector.extract_strided_slice %12 {offsets = [0, 128], sizes = [16, 128], strides = [1, 1]} : vector<16x256xf32> to vector<16x128xf32>
    %15 = arith.extf %0 : vector<16x128xbf16> to vector<16x128xf32>
    %16 = arith.mulf %14, %15 : vector<16x128xf32>
    %17 = arith.truncf %16 : vector<16x128xf32> to vector<16x128xbf16>
    %cst_8 = arith.constant dense<0.000000e+00> : vector<16x128xf32>
    %18 = tpu.matmul %17, %2, %cst_8 {dimension_numbers = #tpu.dot_dimension_numbers<[1], [0], [0], [1], [0, 0, 1, 1], [], []>} : vector<16x128xbf16>, vector<128x128xbf16>, vector<16x128xf32> -> vector<16x128xf32>
    %19 = vector.extract_strided_slice %6 {offsets = [0, 256], sizes = [16, 128], strides = [1, 1]} : vector<16x384xf32> to vector<16x128xf32>
    %20 = arith.addf %18, %19 : vector<16x128xf32>
    %21 = math.tanh %20 : vector<16x128xf32>
    %22 = arith.subf %21, %15 : vector<16x128xf32>
    %23 = arith.mulf %13, %22 : vector<16x128xf32>
    %24 = arith.addf %15, %23 : vector<16x128xf32>
    %25 = tpu.iota {dimensions = array<i32: 1>} : vector<16x128xi32>
    %c32_i32 = arith.constant 32 : i32
    %26 = vector.broadcast %c32_i32 : i32 to vector<16x128xi32>
    %27 = arith.cmpi slt, %25, %26 : vector<16x128xi32>
    %cst_9 = arith.constant 0.000000e+00 : f32
    %28 = vector.broadcast %cst_9 : f32 to vector<16x128xf32>
    %29 = arith.select %27, %24, %28 : vector<16x128xi1>, vector<16x128xf32>
    %30 = arith.truncf %29 : vector<16x128xf32> to vector<16x128xbf16>
    %c0_10 = arith.constant 0 : index
    %c0_11 = arith.constant 0 : index
    %31 = vector.load %arg5[%c0_10, %c0_11] : memref<16x128xbf16, #tpu.memory_space<vmem>>, vector<16x128xbf16>
    tpu.vector_store %arg5[%c0_10, %c0_11], %30 {strides = array<i32>} : memref<16x128xbf16, #tpu.memory_space<vmem>>, vector<16x128xbf16>,
    return
  }
  func.func @transform_0(%arg0: i32) -> (i32, i32) {
    %c0_i32 = arith.constant 0 : i32
    %c0_i32_0 = arith.constant 0 : i32
    return %arg0, %c0_i32 : i32, i32
  }
  func.func @transform_1(%arg0: i32) -> (i32, i32) {
    %c0_i32 = arith.constant 0 : i32
    %c0_i32_0 = arith.constant 0 : i32
    %c0_i32_1 = arith.constant 0 : i32
    return %c0_i32, %c0_i32_0 : i32, i32
  }
  func.func @transform_2(%arg0: i32) -> (i32, i32) {
    %c0_i32 = arith.constant 0 : i32
    %c0_i32_0 = arith.constant 0 : i32
    %c0_i32_1 = arith.constant 0 : i32
    return %c0_i32, %c0_i32_0 : i32, i32
  }
  func.func @transform_3(%arg0: i32) -> (i32, i32) {
    %c0_i32 = arith.constant 0 : i32
    %c0_i32_0 = arith.constant 0 : i32
    %c0_i32_1 = arith.constant 0 : i32
    return %c0_i32, %c0_i32_0 : i32, i32
  }
  func.func @transform_4(%arg0: i32) -> (i32, i32) {
    %c0_i32 = arith.constant 0 : i32
    %c0_i32_0 = arith.constant 0 : i32
    return %arg0, %c0_i32 : i32, i32
  }
}

</mosaic_0001>

<llo_original>
// kernel: tpu_custom_call.1
$region0: #{tpu_custom_call.1}
  #allocation0 [shape = 'u32[]', space=smem, size = 0x4, offset = 0x4, fixed_abs, tag = 'smem constant byte address 0x4 - core index']
  #allocation1 [shape = 'u32[144,128]{1,0:T(1,128)}', space=vmem, size = 0x12000, scoped, tag = 'internal scratch']
  %s0 = inlined_call_operand.hbm [shape: bf16[16,128], index: 0, kind: input, shape index: {}]
  %s1 = inlined_call_operand.hbm [shape: bf16[128,384], index: 1, kind: input, shape index: {}]
  %s2 = inlined_call_operand.hbm [shape: bf16[128,128], index: 2, kind: input, shape index: {}]
  %s3 = inlined_call_operand.vmem [shape: f32[1,384], index: 3, kind: input, shape index: {}]
  %s4 = inlined_call_operand.hbm [shape: bf16[16,128], index: 4, kind: output, shape index: {}]
  %s5 = sld [smem:[#allocation0]]
  $region38: #{tpu_custom_call.1} parent=0
    _
  %s7 = ssub.s32 1, %s5
  %s8 = scalar_select 0, %s7, %s5
  $region1: #{tpu_custom_call.1} parent=0
    #allocation2 [shape = 'u8[4096]{0}', space=vmem, size = 0x1000, scoped, tag = 'input window, operand 0, single buffered']
    #allocation3 [shape = 's32[1]{0}', space=sflag, size = 0x4, scoped, tag = 'scoped memory for tpu_custom_call.1']
    #allocation4 [shape = 's32[1]{0}', space=sflag, size = 0x4, scoped, tag = 'scoped memory for tpu_custom_call.1']
    #allocation5 [shape = 'u8[98304]{0}', space=vmem, size = 0x18000, scoped, tag = 'input window, operand 1, single buffered']
    #allocation6 [shape = 's32[1]{0}', space=sflag, size = 0x4, scoped, tag = 'scoped memory for tpu_custom_call.1']
    #allocation7 [shape = 'u8[32768]{0}', space=vmem, size = 0x8000, scoped, tag = 'input window, operand 2, single buffered']
    #allocation8 [shape = 'u8[4096]{0}', space=vmem, size = 0x1000, scoped, tag = 'output window, operand 0, single buffered']
    %9 = vsyncpa [#allocation3], 0
    %10 = vsyncpa [#allocation6], 0
    %11 = vsyncpa [#allocation4], 0
    // Predicated region
    $region2: #{tpu_custom_call.1} parent=1 // pred_check
      _
    $region3: #{tpu_custom_call.1} parent=1 // pred_check_branch
      %13 = sbr.rel (0) target = $region5
    $region4: #{tpu_custom_call.1} parent=1 // pred_region
      %s15 = ssub.s32 128, 128
      %16 = vsyncadd [#allocation3], %s15
      %s17 = sshll.u32 [#allocation2], 4
      %s18 = int_to_ptr.vmem [resolvable:$true] %s17
      %23 = dma.hbm_to_vmem [thread:$0]  %s0, 128, %s18, [#allocation3], 64, 64, 4
    $region5: #{tpu_custom_call.1} parent=1 // pred_fallthru
      _
    // Predicated region
    $region6: #{tpu_custom_call.1} parent=1 // pred_check
      _
    $region7: #{tpu_custom_call.1} parent=1 // pred_check_branch
      %25 = sbr.rel (0) target = $region9
    $region8: #{tpu_custom_call.1} parent=1 // pred_region
      %s27 = ssub.s32 3072, 3072
      %28 = vsyncadd [#allocation6], %s27
      %s29 = sshll.u32 [#allocation5], 4
      %s30 = int_to_ptr.vmem [resolvable:$true] %s29
      %35 = dma.hbm_to_vmem [thread:$0]  %s1, 3072, %s30, [#allocation6], 192, 192, 12
    $region9: #{tpu_custom_call.1} parent=1 // pred_fallthru
      _
    // Predicated region
    $region10: #{tpu_custom_call.1} parent=1 // pred_check
      _
    $region11: #{tpu_custom_call.1} parent=1 // pred_check_branch
      %37 = sbr.rel (0) target = $region13
    $region12: #{tpu_custom_call.1} parent=1 // pred_region
      %s39 = ssub.s32 1024, 1024
      %40 = vsyncadd [#allocation6], %s39
      %s41 = sshll.u32 [#allocation7], 4
      %s42 = int_to_ptr.vmem [resolvable:$true] %s41
      %47 = dma.hbm_to_vmem [thread:$0]  %s2, 1024, %s42, [#allocation6], 64, 64, 4
    $region13: #{tpu_custom_call.1} parent=1 // pred_fallthru
      _
    // Predicated region
    $region14: #{tpu_custom_call.1} parent=1 // pred_check
      _
    $region15: #{tpu_custom_call.1} parent=1 // pred_check_branch
      %49 = sbr.rel (0) target = $region17
    $region16: #{tpu_custom_call.1} parent=1 // pred_region
      _
    $region17: #{tpu_custom_call.1} parent=1 // pred_fallthru
      _
    // Predicated region
    $region18: #{tpu_custom_call.1} parent=1 // pred_check
      _
    $region19: #{tpu_custom_call.1} parent=1 // pred_check_branch
      %51 = sbr.rel (0) target = $region21
    $region20: #{tpu_custom_call.1} parent=1 // pred_region
      %52 = dma.done [#allocation3], 128
    $region21: #{tpu_custom_call.1} parent=1 // pred_fallthru
      _
    // Predicated region
    $region22: #{tpu_custom_call.1} parent=1 // pred_check
      _
    $region23: #{tpu_custom_call.1} parent=1 // pred_check_branch
      %54 = sbr.rel (0) target = $region25
    $region24: #{tpu_custom_call.1} parent=1 // pred_region
      %55 = dma.done [#allocation6], 3072
    $region25: #{tpu_custom_call.1} parent=1 // pred_fallthru
      _
    // Predicated region
    $region26: #{tpu_custom_call.1} parent=1 // pred_check
      _
    $region27: #{tpu_custom_call.1} parent=1 // pred_check_branch
      %57 = sbr.rel (0) target = $region29
    $region28: #{tpu_custom_call.1} parent=1 // pred_region
      %58 = dma.done [#allocation6], 1024
    $region29: #{tpu_custom_call.1} parent=1 // pred_fallthru
      _
    %v60 = vld [vmem:[#allocation2] sm:$0xf]
    %v61 = vld [vmem:[#allocation2 + $0x4] sm:$0xf]
    %v62 = vld [vmem:[#allocation5] sm:$0xff]
    %v63 = vld [vmem:[#allocation5 + $0x8] sm:$0xf]
    %v64 = vld [vmem:[#allocation5 + $0xc] sm:$0xff]
    %v65 = vld [vmem:[#allocation5 + $0x14] sm:$0xf]
    %v66 = vld [vmem:[#allocation5 + $0x18] sm:$0xff]
    %v67 = vld [vmem:[#allocation5 + $0x20] sm:$0xf]
    %v68 = vld [vmem:[#allocation5 + $0x24] sm:$0xff]
    %v69 = vld [vmem:[#allocation5 + $0x2c] sm:$0xf]
    %v70 = vld [vmem:[#allocation5 + $0x30] sm:$0xff]
    %v71 = vld [vmem:[#allocation5 + $0x38] sm:$0xf]
    %v72 = vld [vmem:[#allocation5 + $0x3c] sm:$0xff]
    %v73 = vld [vmem:[#allocation5 + $0x44] sm:$0xf]
    %v74 = vld [vmem:[#allocation5 + $0x48] sm:$0xff]
    %v75 = vld [vmem:[#allocation5 + $0x50] sm:$0xf]
    %v76 = vld [vmem:[#allocation5 + $0x54] sm:$0xff]
    %v77 = vld [vmem:[#allocation5 + $0x5c] sm:$0xf]
    %v78 = vld [vmem:[#allocation5 + $0x60] sm:$0xff]
    %v79 = vld [vmem:[#allocation5 + $0x68] sm:$0xf]
    %v80 = vld [vmem:[#allocation5 + $0x6c] sm:$0xff]
    %v81 = vld [vmem:[#allocation5 + $0x74] sm:$0xf]
    %v82 = vld [vmem:[#allocation5 + $0x78] sm:$0xff]
    %v83 = vld [vmem:[#allocation5 + $0x80] sm:$0xf]
    %v84 = vld [vmem:[#allocation5 + $0x84] sm:$0xff]
    %v85 = vld [vmem:[#allocation5 + $0x8c] sm:$0xf]
    %v86 = vld [vmem:[#allocation5 + $0x90] sm:$0xff]
    %v87 = vld [vmem:[#allocation5 + $0x98] sm:$0xf]
    %v88 = vld [vmem:[#allocation5 + $0x9c] sm:$0xff]
    %v89 = vld [vmem:[#allocation5 + $0xa4] sm:$0xf]
    %v90 = vld [vmem:[#allocation5 + $0xa8] sm:$0xff]
    %v91 = vld [vmem:[#allocation5 + $0xb0] sm:$0xf]
    %v92 = vld [vmem:[#allocation5 + $0xb4] sm:$0xff]
    %v93 = vld [vmem:[#allocation5 + $0xbc] sm:$0xf]
    %v94 = vld [vmem:[#allocation7] sm:$0xf]
    %v95 = vld [vmem:[#allocation7 + $0x4] sm:$0xf]
    %v96 = vld [vmem:[#allocation7 + $0x8] sm:$0xf]
    %v97 = vld [vmem:[#allocation7 + $0xc] sm:$0xf]
    %v98 = vld [vmem:[#allocation7 + $0x10] sm:$0xf]
    %v99 = vld [vmem:[#allocation7 + $0x14] sm:$0xf]
    %v100 = vld [vmem:[#allocation7 + $0x18] sm:$0xf]
    %v101 = vld [vmem:[#allocation7 + $0x1c] sm:$0xf]
    %v102 = vld [vmem:[#allocation7 + $0x20] sm:$0xf]
    %v103 = vld [vmem:[#allocation7 + $0x24] sm:$0xf]
    %v104 = vld [vmem:[#allocation7 + $0x28] sm:$0xf]
    %v105 = vld [vmem:[#allocation7 + $0x2c] sm:$0xf]
    %v106 = vld [vmem:[#allocation7 + $0x30] sm:$0xf]
    %v107 = vld [vmem:[#allocation7 + $0x34] sm:$0xf]
    %v108 = vld [vmem:[#allocation7 + $0x38] sm:$0xf]
    %v109 = vld [vmem:[#allocation7 + $0x3c] sm:$0xf]
    %v110 = vld [vmem:[%s3] sm:$0x7]
    %v112 = vlaneseq
    %v113 = vshrl.u32 %v112, 7
    %v114 = vsub.s32 0, %v113
    %v115 = vrot.slane %v110, %v114
    %v116 = vlaneseq
    %v117 = vshrl.u32 %v116, 7
    %v118 = vsub.s32 1, %v117
    %v119 = vrot.slane %v110, %v118
    %v120 = vlaneseq
    %v121 = vshrl.u32 %v120, 7
    %v122 = vsub.s32 2, %v121
    %v123 = vrot.slane %v110, %v122
    %v129 = vunpack.c.l.b16 %v60
    %v130 = vunpack.c.l.b16 %v61
    %v131 = vpack.c.b16 %v130, %v129
    %v165 = vunpack.c.l.b16 %v62
    %v166 = vunpack.c.h.b16 %v62
    %v167 = vunpack.c.l.b16 %v63
    %v168 = vunpack.c.l.b16 %v64
    %v169 = vunpack.c.h.b16 %v64
    %v170 = vunpack.c.l.b16 %v65
    %v171 = vunpack.c.l.b16 %v66
    %v172 = vunpack.c.h.b16 %v66
    %v173 = vunpack.c.l.b16 %v67
    %v174 = vunpack.c.l.b16 %v68
    %v175 = vunpack.c.h.b16 %v68
    %v176 = vunpack.c.l.b16 %v69
    %v177 = vunpack.c.l.b16 %v70
    %v178 = vunpack.c.h.b16 %v70
    %v179 = vunpack.c.l.b16 %v71
    %v180 = vunpack.c.l.b16 %v72
    %v181 = vunpack.c.h.b16 %v72
    %v182 = vunpack.c.l.b16 %v73
    %v183 = vunpack.c.l.b16 %v74
    %v184 = vunpack.c.h.b16 %v74
    %v185 = vunpack.c.l.b16 %v75
    %v186 = vunpack.c.l.b16 %v76
    %v187 = vunpack.c.h.b16 %v76
    %v188 = vunpack.c.l.b16 %v77
    %v189 = vunpack.c.l.b16 %v78
    %v190 = vunpack.c.h.b16 %v78
    %v191 = vunpack.c.l.b16 %v79
    %v192 = vunpack.c.l.b16 %v80
    %v193 = vunpack.c.h.b16 %v80
    %v194 = vunpack.c.l.b16 %v81
    %v195 = vunpack.c.l.b16 %v82
    %v196 = vunpack.c.h.b16 %v82
    %v197 = vunpack.c.l.b16 %v83
    %v198 = vunpack.c.l.b16 %v84
    %v199 = vunpack.c.h.b16 %v84
    %v200 = vunpack.c.l.b16 %v85
    %v201 = vunpack.c.l.b16 %v86
    %v202 = vunpack.c.h.b16 %v86
    %v203 = vunpack.c.l.b16 %v87
    %v204 = vunpack.c.l.b16 %v88
    %v205 = vunpack.c.h.b16 %v88
    %v206 = vunpack.c.l.b16 %v89
    %v207 = vunpack.c.l.b16 %v90
    %v208 = vunpack.c.h.b16 %v90
    %v209 = vunpack.c.l.b16 %v91
    %v210 = vunpack.c.l.b16 %v92
    %v211 = vunpack.c.h.b16 %v92
    %v212 = vunpack.c.l.b16 %v93
    %v213 = vpack.c.b16 %v168, %v165
    %v214 = vpack.c.b16 %v169, %v166
    %v215 = vpack.c.b16 %v170, %v167
    %v216 = vpack.c.b16 %v174, %v171
    %v217 = vpack.c.b16 %v175, %v172
    %v218 = vpack.c.b16 %v176, %v173
    %v219 = vpack.c.b16 %v180, %v177
    %v220 = vpack.c.b16 %v181, %v178
    %v221 = vpack.c.b16 %v182, %v179
    %v222 = vpack.c.b16 %v186, %v183
    %v223 = vpack.c.b16 %v187, %v184
    %v224 = vpack.c.b16 %v188, %v185
    %v225 = vpack.c.b16 %v192, %v189
    %v226 = vpack.c.b16 %v193, %v190
    %v227 = vpack.c.b16 %v194, %v191
    %v228 = vpack.c.b16 %v198, %v195
    %v229 = vpack.c.b16 %v199, %v196
    %v230 = vpack.c.b16 %v200, %v197
    %v231 = vpack.c.b16 %v204, %v201
    %v232 = vpack.c.b16 %v205, %v202
    %v233 = vpack.c.b16 %v206, %v203
    %v234 = vpack.c.b16 %v210, %v207
    %v235 = vpack.c.b16 %v211, %v208
    %v236 = vpack.c.b16 %v212, %v209
    %261 = vmatprep.subr.bf16.mxu0 %v235
    %262 = vmatpush1.bf16.msra.mxu0 %v234
    %263 = vmatprep.subr.bf16.mxu0 %v232
    %264 = vmatpush1.bf16.msra.mxu0 %v231
    %265 = vmatprep.subr.bf16.mxu0 %v229
    %266 = vmatpush1.bf16.msra.mxu0 %v228
    %267 = vmatprep.subr.bf16.mxu0 %v226
    %268 = vmatpush1.bf16.msra.mxu0 %v225
    %269 = vmatprep.subr.bf16.mxu0 %v223
    %270 = vmatpush1.bf16.msra.mxu0 %v222
    %271 = vmatprep.subr.bf16.mxu0 %v220
    %272 = vmatpush1.bf16.msra.mxu0 %v219
    %273 = vmatprep.subr.bf16.mxu0 %v217
    %274 = vmatpush1.bf16.msra.mxu0 %v216
    %275 = vmatprep.subr.bf16.mxu0 %v214
    %276 = vmatpush1.bf16.msra.mxu0 %v213
    %277 = vmatprep.subr.bf16.mxu0 0
    %278 = vmatpush2.bf16.msra.mxu0 0
    %279 = vmatprep.subr.bf16.mxu0 0
    %280 = vmatpush2.bf16.msra.mxu0 0
    %281 = vmatprep.subr.bf16.mxu0 0
    %282 = vmatpush2.bf16.msra.mxu0 0
    %283 = vmatprep.subr.bf16.mxu0 0
    %284 = vmatpush2.bf16.msra.mxu0 0
    %285 = vmatprep.subr.bf16.mxu0 0
    %286 = vmatpush2.bf16.msra.mxu0 0
    %287 = vmatprep.subr.bf16.mxu0 0
    %288 = vmatpush2.bf16.msra.mxu0 0
    %289 = vmatprep.subr.bf16.mxu0 0
    %290 = vmatpush2.bf16.msra.mxu0 0
    %291 = vmatprep.subr.bf16.mxu0 0
    %292 = vmatpush2.bf16.msra.mxu0 0
    %293 = vmatprep.mubr.bf16.mxu0 0
    %294 = vmatmul.mubr.bf16.gmra.mxu0 %v131
    %v295 = vpop.f32.mrf.mxu0
    %v296 = vadd.f32 %v115, %v295
    %v297 = vpop.f32.mrf.mxu0
    %v298 = vadd.f32 %v119, %v297
    %v299 = vpop.f32.mrf.mxu0
    %v300 = vadd.f32 %v115, %v299
    %v301 = vpop.f32.mrf.mxu0
    %v302 = vadd.f32 %v119, %v301
    %303 = vdwg.mxu0
    %304 = vmatprep.subr.bf16.mxu0 0
    %305 = vmatpush1.bf16.msra.mxu0 %v236
    %306 = vmatprep.subr.bf16.mxu0 0
    %307 = vmatpush1.bf16.msra.mxu0 %v233
    %308 = vmatprep.subr.bf16.mxu0 0
    %309 = vmatpush1.bf16.msra.mxu0 %v230
    %310 = vmatprep.subr.bf16.mxu0 0
    %311 = vmatpush1.bf16.msra.mxu0 %v227
    %312 = vmatprep.subr.bf16.mxu0 0
    %313 = vmatpush1.bf16.msra.mxu0 %v224
    %314 = vmatprep.subr.bf16.mxu0 0
    %315 = vmatpush1.bf16.msra.mxu0 %v221
    %316 = vmatprep.subr.bf16.mxu0 0
    %317 = vmatpush1.bf16.msra.mxu0 %v218
    %318 = vmatprep.subr.bf16.mxu0 0
    %319 = vmatpush1.bf16.msra.mxu0 %v215
    %320 = vmatprep.subr.bf16.mxu0 0
    %321 = vmatpush2.bf16.msra.mxu0 0
    %322 = vmatprep.subr.bf16.mxu0 0
    %323 = vmatpush2.bf16.msra.mxu0 0
    %324 = vmatprep.subr.bf16.mxu0 0
    %325 = vmatpush2.bf16.msra.mxu0 0
    %326 = vmatprep.subr.bf16.mxu0 0
    %327 = vmatpush2.bf16.msra.mxu0 0
    %328 = vmatprep.subr.bf16.mxu0 0
    %329 = vmatpush2.bf16.msra.mxu0 0
    %330 = vmatprep.subr.bf16.mxu0 0
    %331 = vmatpush2.bf16.msra.mxu0 0
    %332 = vmatprep.subr.bf16.mxu0 0
    %333 = vmatpush2.bf16.msra.mxu0 0
    %334 = vmatprep.subr.bf16.mxu0 0
    %335 = vmatpush2.bf16.msra.mxu0 0
    %336 = vmatprep.mubr.bf16.mxu0 0
    %337 = vmatmul.mubr.bf16.gmra.mxu0 %v131
    %v338 = vpop.f32.mrf.mxu0
    %v339 = vadd.f32 %v123, %v338
    %v340 = vpop.f32.mrf.mxu0
    %v341 = vpop.f32.mrf.mxu0
    %v342 = vadd.f32 %v123, %v341
    %v343 = vpop.f32.mrf.mxu0
    %344 = vdwg.mxu0
    %v345 = vxor.u32 %v296, 2147483648
    %v346 = vxor.u32 %v298, 2147483648
    %v347 = vxor.u32 %v300, 2147483648
    %v348 = vxor.u32 %v302, 2147483648
    %v349 = vmul.f32 %v345, 1.442695
    %v350 = vpow.pop %v349
    %v351 = vmul.f32 %v346, 1.442695
    %v352 = vpow.pop %v351
    %v353 = vmul.f32 %v347, 1.442695
    %v354 = vpow.pop %v353
    %v355 = vmul.f32 %v348, 1.442695
    %v356 = vpow.pop %v355
    %v357 = vadd.f32 %v350, 1.0
    %v358 = vadd.f32 %v352, 1.0
    %v359 = vadd.f32 %v354, 1.0
    %v360 = vadd.f32 %v356, 1.0
    %v361 = vrcp.pop %v357
    %v362 = vmul.f32 1.0, %v361
    %v363 = vrcp.pop %v358
    %v364 = vmul.f32 1.0, %v363
    %v365 = vrcp.pop %v359
    %v366 = vmul.f32 1.0, %v365
    %v367 = vrcp.pop %v360
    %v368 = vmul.f32 1.0, %v367
    %v369 = vunpack.c.l.bf16 %v60
    %v370 = vunpack.c.l.bf16 %v61
    %v371 = vmul.f32 %v364, %v369
    %v372 = vmul.f32 %v368, %v370
    %v373 = vpack.c.bf16 %v372, %v371
    %v390 = vunpack.c.l.b16 %v94
    %v391 = vunpack.c.l.b16 %v95
    %v392 = vunpack.c.l.b16 %v96
    %v393 = vunpack.c.l.b16 %v97
    %v394 = vunpack.c.l.b16 %v98
    %v395 = vunpack.c.l.b16 %v99
    %v396 = vunpack.c.l.b16 %v100
    %v397 = vunpack.c.l.b16 %v101
    %v398 = vunpack.c.l.b16 %v102
    %v399 = vunpack.c.l.b16 %v103
    %v400 = vunpack.c.l.b16 %v104
    %v401 = vunpack.c.l.b16 %v105
    %v402 = vunpack.c.l.b16 %v106
    %v403 = vunpack.c.l.b16 %v107
    %v404 = vunpack.c.l.b16 %v108
    %v405 = vunpack.c.l.b16 %v109
    %v406 = vpack.c.b16 %v391, %v390
    %v407 = vpack.c.b16 %v393, %v392
    %v408 = vpack.c.b16 %v395, %v394
    %v409 = vpack.c.b16 %v397, %v396
    %v410 = vpack.c.b16 %v399, %v398
    %v411 = vpack.c.b16 %v401, %v400
    %v412 = vpack.c.b16 %v403, %v402
    %v413 = vpack.c.b16 %v405, %v404
    %422 = vmatprep.subr.bf16.mxu0 0
    %423 = vmatpush1.bf16.msra.mxu0 %v413
    %424 = vmatprep.subr.bf16.mxu0 0
    %425 = vmatpush1.bf16.msra.mxu0 %v412
    %426 = vmatprep.subr.bf16.mxu0 0
    %427 = vmatpush1.bf16.msra.mxu0 %v411
    %428 = vmatprep.subr.bf16.mxu0 0
    %429 = vmatpush1.bf16.msra.mxu0 %v410
    %430 = vmatprep.subr.bf16.mxu0 0
    %431 = vmatpush1.bf16.msra.mxu0 %v409
    %432 = vmatprep.subr.bf16.mxu0 0
    %433 = vmatpush1.bf16.msra.mxu0 %v408
    %434 = vmatprep.subr.bf16.mxu0 0
    %435 = vmatpush1.bf16.msra.mxu0 %v407
    %436 = vmatprep.subr.bf16.mxu0 0
    %437 = vmatpush1.bf16.msra.mxu0 %v406
    %438 = vmatprep.subr.bf16.mxu0 0
    %439 = vmatpush2.bf16.msra.mxu0 0
    %440 = vmatprep.subr.bf16.mxu0 0
    %441 = vmatpush2.bf16.msra.mxu0 0
    %442 = vmatprep.subr.bf16.mxu0 0
    %443 = vmatpush2.bf16.msra.mxu0 0
    %444 = vmatprep.subr.bf16.mxu0 0
    %445 = vmatpush2.bf16.msra.mxu0 0
    %446 = vmatprep.subr.bf16.mxu0 0
    %447 = vmatpush2.bf16.msra.mxu0 0
    %448 = vmatprep.subr.bf16.mxu0 0
    %449 = vmatpush2.bf16.msra.mxu0 0
    %450 = vmatprep.subr.bf16.mxu0 0
    %451 = vmatpush2.bf16.msra.mxu0 0
    %452 = vmatprep.subr.bf16.mxu0 0
    %453 = vmatpush2.bf16.msra.mxu0 0
    %454 = vmatprep.mubr.bf16.mxu0 0
    %455 = vmatmul.mubr.bf16.gmra.mxu0 %v373
    %v456 = vpop.f32.mrf.mxu0
    %v457 = vadd.f32 %v339, %v456
    %v458 = vpop.f32.mrf.mxu0
    %v459 = vpop.f32.mrf.mxu0
    %v460 = vadd.f32 %v342, %v459
    %v461 = vpop.f32.mrf.mxu0
    %462 = vdwg.mxu0
    %v463 = vtanh.pop %v457
    %v464 = vtanh.pop %v460
    %v465 = vsub.f32 %v463, %v369
    %v466 = vsub.f32 %v464, %v370
    %v467 = vmul.f32 %v362, %v465
    %v468 = vmul.f32 %v366, %v466
    %v469 = vadd.f32 %v369, %v467
    %v470 = vadd.f32 %v370, %v468
    %v471 = vlaneseq
    %v472 = vand.u32 %v471, 127
    %vm473 = vcmp.lt.s32.totalorder %v472, 32
    %v474 = vsel %vm473, %v469, 0.0
    %v475 = vsel %vm473, %v470, 0.0
    %v476 = vpack.c.bf16 %v475, %v474
    %v478 = vunpack.c.l.b16 %v476
    %v479 = vunpack.c.h.b16 %v476
    %v480 = vpack.c.b16 %v478, %v478
    %v481 = vpack.c.b16 %v479, %v479
    %484 = vst [vmem:[#allocation8] sm:$0xf] %v480
    %485 = vst [vmem:[#allocation8 + $0x4] sm:$0xf] %v481
    // Predicated region
    $region30: #{tpu_custom_call.1} parent=1 // pred_check
      _
    $region31: #{tpu_custom_call.1} parent=1 // pred_check_branch
      %487 = sbr.rel (0) target = $region33
    $region32: #{tpu_custom_call.1} parent=1 // pred_region
      %s489 = ssub.s32 128, 128
      %490 = vsyncadd [#allocation4], %s489
      %s491 = sshll.u32 [#allocation8], 4
      %s492 = int_to_ptr.vmem [resolvable:$true] %s491
      %497 = dma.vmem_to_hbm [thread:$0]  %s492, 128, %s4, [#allocation4], 64, 64, 4
    $region33: #{tpu_custom_call.1} parent=1 // pred_fallthru
      _
    // Predicated region
    $region34: #{tpu_custom_call.1} parent=1 // pred_check
      _
    $region35: #{tpu_custom_call.1} parent=1 // pred_check_branch
      %499 = sbr.rel (0) target = $region37
    $region36: #{tpu_custom_call.1} parent=1 // pred_region
      %500 = dma.done [#allocation4], 128
    $region37: #{tpu_custom_call.1} parent=1 // pred_fallthru
      _
    %501 = vsyncpa [#allocation3], 1
    %502 = vsyncpa [#allocation6], 1
    %503 = vsyncpa [#allocation4], 1

</llo_original>
